<compile_context>
chip_gen: v5e
topology: v5e:2x2
jax: 0.10.0
libtpu: 0.0.40
codegen_flags: <defaults>
</compile_context>

<pallas_src>
import jax
import jax.numpy as jnp
from jax.experimental import pallas as pl
from jax.experimental.pallas import tpu as pltpu

LANE = 128


def _round_up(n, m):
    return ((n + m - 1) // m) * m


def _bf16_valu_available():
    # v6e/v7x have a bf16 VALU (packed ReLU is a win); v5e and older do not.
    try:
        kind = jax.devices()[0].device_kind.lower()
    except Exception:
        return True
    return not any(v in kind for v in ("v5", "v4", "v3", "v2"))


def prepare_params(params, compute_dtype=jnp.bfloat16):
    """One-time weight prep: lane-pad, fold layer-2/3 biases, cast to compute dtype.

    Layout tricks (all numerically exact up to the compute-dtype cast):
      * Hidden dims padded to >= dim+1 multiples of 128 so every matmul/ReLU tile is
        lane-dense and there is always a spare "carrier" column.
      * b1 keeps a real bias-add, but its carrier lane is set to 1.0 so that
        h1[:, carrier] = ReLU(0 + 1) = 1.
      * b2 is folded into w2 as the carrier row; w2's own carrier column re-creates a
        constant-1 lane in h2 (ReLU(1) = 1), through which b3 is folded into w3.
    """
    w1, b1 = params["w1"], params["b1"]
    w2, b2 = params["w2"], params["b2"]
    w3, b3 = params["w3"], params["b3"]

    num_inputs, h1d = w1.shape
    h2d = w2.shape[1]
    nod = w3.shape[1]

    h1p = _round_up(h1d + 1, LANE)   # +1 guarantees a spare carrier lane
    h2p = _round_up(h2d + 1, LANE)
    nop = _round_up(nod, LANE)

    cdt = jnp.dtype(compute_dtype)

    w1p = jnp.zeros((num_inputs, h1p), jnp.float32).at[:, :h1d].set(w1).astype(cdt)
    b1p = (jnp.zeros((1, h1p), jnp.float32)
           .at[:, :h1d].set(b1.reshape(1, -1))
           .at[0, h1d].set(1.0))                      # carrier lane -> h1[:, h1d] == 1
    w2p = (jnp.zeros((h1p, h2p), jnp.float32)
           .at[:h1d, :h2d].set(w2)
           .at[h1d, :h2d].set(b2.reshape(-1))          # fold b2 (multiplied by carrier 1)
           .at[h1d, h2d].set(1.0)                      # re-create carrier in h2
           .astype(cdt))
    w3p = (jnp.zeros((h2p, nop), jnp.float32)
           .at[:h2d, :nod].set(w3)
           .at[h2d, :nod].set(b3.reshape(-1))          # fold b3
           .astype(cdt))

    return {"w1p": w1p, "b1p": b1p, "w2p": w2p, "w3p": w3p,
            "num_outputs": nod, "compute_dtype": cdt}


def _make_kernel(num_outputs, compute_dtype, relu_in_compute_dtype):
    cdt = jnp.dtype(compute_dtype)

    def kernel(x_ref, w1_ref, b1_ref, w2_ref, w3_ref, o_ref):
        # x arrives as the raw f32 HBM stream; cast on the VPU (hidden under the DMA).
        x = x_ref[...].astype(cdt)

        # Layer 1: MXU matmul (f32 accumulate) + f32 bias-add; carrier lane becomes 1.
        h1 = jnp.dot(x, w1_ref[...], preferred_element_type=jnp.float32) + b1_ref[...]
        if relu_in_compute_dtype:
            h1 = jnp.maximum(h1.astype(cdt), 0)        # packed bf16 ReLU (v6e/v7x)
        else:
            h1 = jnp.maximum(h1, 0.0).astype(cdt)      # f32 ReLU (v5e)

        # Layer 2: bias already folded into w2 via the carrier lane of h1.
        h2 = jnp.dot(h1, w2_ref[...], preferred_element_type=jnp.float32)
        if relu_in_compute_dtype:
            h2 = jnp.maximum(h2.astype(cdt), 0)
        else:
            h2 = jnp.maximum(h2, 0.0).astype(cdt)

        # Layer 3: bias folded into w3 via the carrier lane of h2.
        logits = jnp.dot(h2, w3_ref[...], preferred_element_type=jnp.float32)
        # Store only the real output columns; block covers full rows so the HBM
        # writeback is a contiguous (masked on the ragged tail) DMA.
        o_ref[...] = logits[:, :num_outputs].astype(o_ref.dtype)

    return kernel


def neural_network_forward(x, prepared, *, batch_tile=2048, relu_in_compute_dtype=None):
    """Pallas forward pass of the PyTorch NeuralNetwork module.

    x: (B, num_inputs) float32
    prepared: output of prepare_params(params, compute_dtype)
    """
    w1p, b1p, w2p, w3p = prepared["w1p"], prepared["b1p"], prepared["w2p"], prepared["w3p"]
    num_outputs = prepared["num_outputs"]
    cdt = prepared["compute_dtype"]

    B, num_inputs = x.shape
    assert w1p.shape[0] == num_inputs, "x feature dim does not match prepared weights"

    if relu_in_compute_dtype is None:
        relu_in_compute_dtype = _bf16_valu_available()
    low_prec_relu = bool(relu_in_compute_dtype) and cdt != jnp.dtype(jnp.float32)

    # Batch tiling: packed-sublane alignment (8 rows f32, 16 rows bf16, 32 for 8-bit),
    # tile capped so the grid has >=2 steps whenever B allows (dual-TC sharding on v7x).
    itemsize = cdt.itemsize
    row_align = 8 if itemsize >= 4 else (16 if itemsize == 2 else 32)
    half = _round_up(max(1, -(-B // 2)), row_align)
    tile = _round_up(max(row_align, min(batch_tile, half)), row_align)
    grid = (pl.cdiv(B, tile),)   # ragged last block is masked by Pallas

    kernel = _make_kernel(num_outputs, cdt, low_prec_relu)

    def rep(a):
        # Replicated block: same block index every grid step -> no re-DMA.
        return pl.BlockSpec(a.shape, lambda i: (0, 0))

    return pl.pallas_call(
        kernel,
        out_shape=jax.ShapeDtypeStruct((B, num_outputs), jnp.float32),
        grid_spec=pltpu.PrefetchScalarGridSpec(
            num_scalar_prefetch=0,
            grid=grid,
            in_specs=[
                pl.BlockSpec((tile, num_inputs), lambda i: (i, 0)),   # x stays f32 in HBM
                rep(w1p), rep(b1p), rep(w2p), rep(w3p),
            ],
            out_specs=pl.BlockSpec((tile, num_outputs), lambda i: (i, 0)),
        ),
        compiler_params=pltpu.CompilerParams(
            dimension_semantics=("parallel",),
        ),
    )(x, w1p, b1p, w2p, w3p)


def init_params(key, num_inputs, num_outputs):
    """Deterministic init mimicking PyTorch Linear default (uniform +-1/sqrt(fan_in))."""
    def linear(key, fan_in, fan_out):
        kw, kb = jax.random.split(key)
        bound = 1.0 / jnp.sqrt(fan_in)
        w = jax.random.uniform(kw, (fan_in, fan_out), jnp.float32, -bound, bound)
        b = jax.random.uniform(kb, (1, fan_out), jnp.float32, -bound, bound)
        return w, b

    k1, k2, k3 = jax.random.split(key, 3)
    w1, b1 = linear(k1, num_inputs, 30)
    w2, b2 = linear(k2, 30, 20)
    w3, b3 = linear(k3, 20, num_outputs)
    return {"w1": w1, "b1": b1, "w2": w2, "b2": b2, "w3": w3, "b3": b3}


def reference_forward(x, p):
    h1 = jnp.maximum(x @ p["w1"] + p["b1"], 0.0)
    h2 = jnp.maximum(h1 @ p["w2"] + p["b2"], 0.0)
    return h2 @ p["w3"] + p["b3"]


if __name__ == "__main__":
    num_inputs, num_outputs = 32, 4
    batch = 24  # deliberately not a tile multiple; exercises the masked ragged tail

    key = jax.random.PRNGKey(0)
    kx, kp = jax.random.split(key)
    x = jax.random.normal(kx, (batch, num_inputs), jnp.float32)
    params = init_params(kp, num_inputs, num_outputs)

    ref = reference_forward(x, params)

    # Exact f32 path with a multi-step grid (tile=8 -> 3 grid steps).
    prep_f32 = prepare_params(params, compute_dtype=jnp.float32)
    out_f32 = jax.block_until_ready(
        neural_network_forward(x, prep_f32, batch_tile=8)
    )
    assert out_f32.shape == (batch, num_outputs)
    assert jnp.allclose(out_f32, ref, atol=1e-5, rtol=1e-5)

    # Default fast path: f32 x streamed from HBM, cast to bf16 in-kernel, f32 accumulate.
    # tile=16 -> 2 grid steps with a ragged (masked) last block.
    prep_bf16 = prepare_params(params, compute_dtype=jnp.bfloat16)
    out_bf16 = jax.block_until_ready(neural_network_forward(x, prep_bf16))
    assert out_bf16.shape == (batch, num_outputs)
    assert jnp.allclose(out_bf16, ref, atol=5e-2, rtol=5e-2)

    print("KERNEL_OK")
</pallas_src>

<mosaic_0001>
module attributes {stable_mosaic.version = 11 : i64} {
  func.func @kernel(%arg0: i32, %arg1: memref<8x32xf32, #tpu.memory_space<vmem>>, %arg2: memref<32x128xf32, #tpu.memory_space<vmem>>, %arg3: memref<1x128xf32, #tpu.memory_space<vmem>>, %arg4: memref<128x128xf32, #tpu.memory_space<vmem>>, %arg5: memref<128x128xf32, #tpu.memory_space<vmem>>, %arg6: memref<8x4xf32, #tpu.memory_space<vmem>>) attributes {dimension_semantics = [#tpu.dimension_semantics<parallel>], iteration_bounds = array<i64: 3>, scalar_prefetch = 0 : i64, scratch_operands = 0 : i64, tpu.core_type = #tpu.core_type<tc>, window_params = [{transform_indices = @transform_0, window_bounds = array<i64: 8, 32>}, {pipeline_mode = #tpu.pipeline_mode<synchronous>, transform_indices = @transform_1, window_bounds = array<i64: 32, 128>}, {pipeline_mode = #tpu.pipeline_mode<synchronous>, transform_indices = @transform_2, window_bounds = array<i64: 1, 128>}, {pipeline_mode = #tpu.pipeline_mode<synchronous>, transform_indices = @transform_3, window_bounds = array<i64: 128, 128>}, {pipeline_mode = #tpu.pipeline_mode<synchronous>, transform_indices = @transform_4, window_bounds = array<i64: 128, 128>}, {transform_indices = @transform_5, window_bounds = array<i64: 8, 4>}]} {
    %c0 = arith.constant 0 : index
    %c0_0 = arith.constant 0 : index
    %0 = vector.load %arg1[%c0, %c0_0] : memref<8x32xf32, #tpu.memory_space<vmem>>, vector<8x32xf32>
    %c0_1 = arith.constant 0 : index
    %c0_2 = arith.constant 0 : index
    %1 = vector.load %arg2[%c0_1, %c0_2] : memref<32x128xf32, #tpu.memory_space<vmem>>, vector<32x128xf32>
    %cst = arith.constant dense<0.000000e+00> : vector<8x128xf32>
    %2 = tpu.matmul %0, %1, %cst {dimension_numbers = #tpu.dot_dimension_numbers<[1], [0], [0], [1], [0, 0, 1, 1], [], []>} : vector<8x32xf32>, vector<32x128xf32>, vector<8x128xf32> -> vector<8x128xf32>
    %c0_3 = arith.constant 0 : index
    %c0_4 = arith.constant 0 : index
    %3 = vector.load %arg3[%c0_3, %c0_4] : memref<1x128xf32, #tpu.memory_space<vmem>>, vector<1x128xf32>
    %4 = vector.broadcast %3 : vector<1x128xf32> to vector<8x128xf32>
    %5 = arith.addf %2, %4 : vector<8x128xf32>
    %cst_5 = arith.constant 0.000000e+00 : f32
    %6 = vector.broadcast %cst_5 : f32 to vector<8x128xf32>
    %7 = arith.maximumf %5, %6 : vector<8x128xf32>
    %c0_6 = arith.constant 0 : index
    %c0_7 = arith.constant 0 : index
    %8 = vector.load %arg4[%c0_6, %c0_7] : memref<128x128xf32, #tpu.memory_space<vmem>>, vector<128x128xf32>
    %cst_8 = arith.constant dense<0.000000e+00> : vector<8x128xf32>
    %9 = tpu.matmul %7, %8, %cst_8 {dimension_numbers = #tpu.dot_dimension_numbers<[1], [0], [0], [1], [0, 0, 1, 1], [], []>} : vector<8x128xf32>, vector<128x128xf32>, vector<8x128xf32> -> vector<8x128xf32>
    %cst_9 = arith.constant 0.000000e+00 : f32
    %10 = vector.broadcast %cst_9 : f32 to vector<8x128xf32>
    %11 = arith.maximumf %9, %10 : vector<8x128xf32>
    %c0_10 = arith.constant 0 : index
    %c0_11 = arith.constant 0 : index
    %12 = vector.load %arg5[%c0_10, %c0_11] : memref<128x128xf32, #tpu.memory_space<vmem>>, vector<128x128xf32>
    %cst_12 = arith.constant dense<0.000000e+00> : vector<8x128xf32>
    %13 = tpu.matmul %11, %12, %cst_12 {dimension_numbers = #tpu.dot_dimension_numbers<[1], [0], [0], [1], [0, 0, 1, 1], [], []>} : vector<8x128xf32>, vector<128x128xf32>, vector<8x128xf32> -> vector<8x128xf32>
    %14 = vector.extract_strided_slice %13 {offsets = [0, 0], sizes = [8, 4], strides = [1, 1]} : vector<8x128xf32> to vector<8x4xf32>
    %c0_13 = arith.constant 0 : index
    %c0_14 = arith.constant 0 : index
    %15 = vector.load %arg6[%c0_13, %c0_14] : memref<8x4xf32, #tpu.memory_space<vmem>>, vector<8x4xf32>
    tpu.vector_store %arg6[%c0_13, %c0_14], %14 {strides = array<i32>} : memref<8x4xf32, #tpu.memory_space<vmem>>, vector<8x4xf32>,
    return
  }
  func.func @transform_0(%arg0: i32) -> (i32, i32) {
    %c0_i32 = arith.constant 0 : i32
    %c0_i32_0 = arith.constant 0 : i32
    return %arg0, %c0_i32 : i32, i32
  }
  func.func @transform_1(%arg0: i32) -> (i32, i32) {
    %c0_i32 = arith.constant 0 : i32
    %c0_i32_0 = arith.constant 0 : i32
    %c0_i32_1 = arith.constant 0 : i32
    return %c0_i32, %c0_i32_0 : i32, i32
  }
  func.func @transform_2(%arg0: i32) -> (i32, i32) {
    %c0_i32 = arith.constant 0 : i32
    %c0_i32_0 = arith.constant 0 : i32
    %c0_i32_1 = arith.constant 0 : i32
    return %c0_i32, %c0_i32_0 : i32, i32
  }
  func.func @transform_3(%arg0: i32) -> (i32, i32) {
    %c0_i32 = arith.constant 0 : i32
    %c0_i32_0 = arith.constant 0 : i32
    %c0_i32_1 = arith.constant 0 : i32
    return %c0_i32, %c0_i32_0 : i32, i32
  }
  func.func @transform_4(%arg0: i32) -> (i32, i32) {
    %c0_i32 = arith.constant 0 : i32
    %c0_i32_0 = arith.constant 0 : i32
    %c0_i32_1 = arith.constant 0 : i32
    return %c0_i32, %c0_i32_0 : i32, i32
  }
  func.func @transform_5(%arg0: i32) -> (i32, i32) {
    %c0_i32 = arith.constant 0 : i32
    %c0_i32_0 = arith.constant 0 : i32
    return %arg0, %c0_i32 : i32, i32
  }
}

</mosaic_0001>

<llo_original>
// kernel: tpu_custom_call.1
$region0: #{tpu_custom_call.1}
  #allocation0 [shape = 'u32[]', space=smem, size = 0x4, offset = 0x4, fixed_abs, tag = 'smem constant byte address 0x4 - core index']
  #allocation1 [shape = 'u32[72,128]{1,0:T(1,128)}', space=vmem, size = 0x9000, scoped, tag = 'internal scratch']
  %s0 = inlined_call_operand.hbm [shape: f32[24,32], index: 0, kind: input, shape index: {}]
  %s1 = inlined_call_operand.hbm [shape: f32[32,128], index: 1, kind: input, shape index: {}]
  %s2 = inlined_call_operand.vmem [shape: f32[1,128], index: 2, kind: input, shape index: {}]
  %s3 = inlined_call_operand.hbm [shape: f32[128,128], index: 3, kind: input, shape index: {}]
  %s4 = inlined_call_operand.hbm [shape: f32[128,128], index: 4, kind: input, shape index: {}]
  %s5 = inlined_call_operand.vmem [shape: f32[24,4], index: 5, kind: output, shape index: {}]
  %s6 = sld [smem:[#allocation0]]
  $region69: #{tpu_custom_call.1} parent=0
    _
  %s8 = ssub.s32 1, %s6
  %s9 = scalar_select 0, %s8, %s6
  $region1: #{tpu_custom_call.1} parent=0
    #allocation2 [shape = 'u8[8192]{0}', space=vmem, size = 0x2000, scoped, tag = 'input window, operand 0']
    #allocation3 [shape = 's32[2]{0}', space=sflag, size = 0x8, scoped, tag = 'scoped memory for tpu_custom_call.1']
    #allocation4 [shape = 'u8[16384]{0}', space=vmem, size = 0x4000, scoped, tag = 'input window, operand 1, single buffered']
    #allocation5 [shape = 's32[1]{0}', space=sflag, size = 0x4, scoped, tag = 'scoped memory for tpu_custom_call.1']
    #allocation6 [shape = 'u8[65536]{0}', space=vmem, size = 0x10000, scoped, tag = 'input window, operand 3, single buffered']
    #allocation7 [shape = 'u8[65536]{0}', space=vmem, size = 0x10000, scoped, tag = 'input window, operand 4, single buffered']
    #allocation8 [shape = 's32[1]{0}', space=sflag, size = 0x4, scoped, tag = 'scoped memory for tpu_custom_call.1']
    %10 = vsyncpa [#allocation3], 0
    %s11 = scalar_lea.sflag [#allocation3], 1
    %12 = vsyncpa %s11, 0
    %13 = vsyncpa [#allocation5], 0
    %14 = vsyncpa [#allocation8], 0
    loop: start=0, step=1, limit=5
    $region2: #{tpu_custom_call.1} parent=1 // loop_pre_header
      _
    $region3: #{tpu_custom_call.1} parent=1 // loop_header
      %s16 = sphi 0, %s20
      %p17 = scmp.ge.s32.totalorder %s16, 5
      %s26 = sphi 0, %s28
      %s29 = sphi 0, %s26
      %s30 = sphi 0, %s29
      %s46 = sphi 0, %s30
      %s50 = sphi 0, %s50
      %s52 = sphi 0, %s50
      %s53 = sphi 0, %s52
      %s67 = sphi 0, %s53
      %s71 = sphi 0, %s71
      %s73 = sphi 0, %s71
      %s74 = sphi 0, %s73
      %s88 = sphi 0, %s74
      %s92 = sphi 0, %s92
      %s94 = sphi 0, %s92
      %s95 = sphi 0, %s94
      %s109 = sphi 0, %s95
      %s113 = sphi 0, %s113
      %s115 = sphi 0, %s113
      %s116 = sphi 0, %s115
      %s130 = sphi 0, %s116
      %s136 = sphi 0, %s138
      %s139 = sphi 0, %s136
      %s140 = sphi 0, %s139
      %s156 = sphi 0, %s140
    $region4: #{tpu_custom_call.1} parent=1 // loop_header_branch
      %19 = sbr.rel (%p17) target = $region8
    $region5: #{tpu_custom_call.1} parent=1 // loop_body
      %s21 = ssub.s32 %s16, 1
      %s22 = ssub.s32 %s16, 2
      %s23 = sadd.s32 %s16, 1
      %s24 = ssub.s32 %s16, %s23
      %p25 = scmp.eq.s32.totalorder %s24, 0
      %s27 = sadd.s32 %s26, 1
      %s28 = scalar_select %p25, %s26, %s27
      %p31 = pneg %p25
      %p32 = scmp.eq.s32.totalorder %s16, 2
      %p33 = por %p31, %p32
      %p34 = scmp.ne.s32.totalorder %s26, %s29
      %p35 = scmp.eq.s32.totalorder %s16, 0
      %p36 = por %p34, %p35
      %p37 = scmp.ne.s32.totalorder %s26, %s29
      %p38 = scmp.eq.s32.totalorder %s21, 2
      %p39 = por %p37, %p38
      %p40 = scmp.ne.s32.totalorder %s29, %s30
      %p41 = scmp.eq.s32.totalorder %s21, 0
      %p42 = por %p40, %p41
      %p43 = scmp.ne.s32.totalorder %s29, %s30
      %p44 = scmp.eq.s32.totalorder %s22, 2
      %p45 = por %p43, %p44
      %p47 = scmp.ne.s32.totalorder %s30, %s46
      %p48 = scmp.eq.s32.totalorder %s22, 0
      %p49 = por %p47, %p48
      %s51 = sadd.s32 %s50, 1
      %p54 = scmp.eq.s32.totalorder %s16, 2
      %p55 = scmp.ne.s32.totalorder %s50, %s52
      %p56 = scmp.eq.s32.totalorder %s16, 0
      %p57 = por %p55, %p56
      %p58 = scmp.ne.s32.totalorder %s50, %s52
      %p59 = scmp.eq.s32.totalorder %s21, 2
      %p60 = por %p58, %p59
      %p61 = scmp.ne.s32.totalorder %s52, %s53
      %p62 = scmp.eq.s32.totalorder %s21, 0
      %p63 = por %p61, %p62
      %p64 = scmp.ne.s32.totalorder %s52, %s53
      %p65 = scmp.eq.s32.totalorder %s22, 2
      %p66 = por %p64, %p65
      %p68 = scmp.ne.s32.totalorder %s53, %s67
      %p69 = scmp.eq.s32.totalorder %s22, 0
      %p70 = por %p68, %p69
      %s72 = sadd.s32 %s71, 1
      %p75 = scmp.eq.s32.totalorder %s16, 2
      %p76 = scmp.ne.s32.totalorder %s71, %s73
      %p77 = scmp.eq.s32.totalorder %s16, 0
      %p78 = por %p76, %p77
      %p79 = scmp.ne.s32.totalorder %s71, %s73
      %p80 = scmp.eq.s32.totalorder %s21, 2
      %p81 = por %p79, %p80
      %p82 = scmp.ne.s32.totalorder %s73, %s74
      %p83 = scmp.eq.s32.totalorder %s21, 0
      %p84 = por %p82, %p83
      %p85 = scmp.ne.s32.totalorder %s73, %s74
      %p86 = scmp.eq.s32.totalorder %s22, 2
      %p87 = por %p85, %p86
      %p89 = scmp.ne.s32.totalorder %s74, %s88
      %p90 = scmp.eq.s32.totalorder %s22, 0
      %p91 = por %p89, %p90
      %s93 = sadd.s32 %s92, 1
      %p96 = scmp.eq.s32.totalorder %s16, 2
      %p97 = scmp.ne.s32.totalorder %s92, %s94
      %p98 = scmp.eq.s32.totalorder %s16, 0
      %p99 = por %p97, %p98
      %p100 = scmp.ne.s32.totalorder %s92, %s94
      %p101 = scmp.eq.s32.totalorder %s21, 2
      %p102 = por %p100, %p101
      %p103 = scmp.ne.s32.totalorder %s94, %s95
      %p104 = scmp.eq.s32.totalorder %s21, 0
      %p105 = por %p103, %p104
      %p106 = scmp.ne.s32.totalorder %s94, %s95
      %p107 = scmp.eq.s32.totalorder %s22, 2
      %p108 = por %p106, %p107
      %p110 = scmp.ne.s32.totalorder %s95, %s109
      %p111 = scmp.eq.s32.totalorder %s22, 0
      %p112 = por %p110, %p111
      %s114 = sadd.s32 %s113, 1
      %p117 = scmp.eq.s32.totalorder %s16, 2
      %p118 = scmp.ne.s32.totalorder %s113, %s115
      %p119 = scmp.eq.s32.totalorder %s16, 0
      %p120 = por %p118, %p119
      %p121 = scmp.ne.s32.totalorder %s113, %s115
      %p122 = scmp.eq.s32.totalorder %s21, 2
      %p123 = por %p121, %p122
      %p124 = scmp.ne.s32.totalorder %s115, %s116
      %p125 = scmp.eq.s32.totalorder %s21, 0
      %p126 = por %p124, %p125
      %p127 = scmp.ne.s32.totalorder %s115, %s116
      %p128 = scmp.eq.s32.totalorder %s22, 2
      %p129 = por %p127, %p128
      %p131 = scmp.ne.s32.totalorder %s116, %s130
      %p132 = scmp.eq.s32.totalorder %s22, 0
      %p133 = por %p131, %p132
      %s134 = ssub.s32 %s16, %s23
      %p135 = scmp.eq.s32.totalorder %s134, 0
      %s137 = sadd.s32 %s136, 1
      %s138 = scalar_select %p135, %s136, %s137
      %p141 = pneg %p135
      %p142 = scmp.eq.s32.totalorder %s16, 2
      %p143 = por %p141, %p142
      %p144 = scmp.ne.s32.totalorder %s136, %s139
      %p145 = scmp.eq.s32.totalorder %s16, 0
      %p146 = por %p144, %p145
      %p147 = scmp.ne.s32.totalorder %s136, %s139
      %p148 = scmp.eq.s32.totalorder %s21, 2
      %p149 = por %p147, %p148
      %p150 = scmp.ne.s32.totalorder %s139, %s140
      %p151 = scmp.eq.s32.totalorder %s21, 0
      %p152 = por %p150, %p151
      %p153 = scmp.ne.s32.totalorder %s139, %s140
      %p154 = scmp.eq.s32.totalorder %s22, 2
      %p155 = por %p153, %p154
      %p157 = scmp.ne.s32.totalorder %s140, %s156
      %p158 = scmp.eq.s32.totalorder %s22, 0
      %p159 = por %p157, %p158
      %p160 = scmp.le.s32.totalorder 1, %s16
      %p161 = scmp.lt.s32.totalorder %s16, 4
      %p162 = pnand %p160, %p161
      %p163 = pneg %p162
      // Predicated region
      $region9: #{tpu_custom_call.1} parent=5 // pred_check
        _
      $region10: #{tpu_custom_call.1} parent=5 // pred_check_branch
        %165 = sbr.rel (%p162) target = $region12
      $region11: #{tpu_custom_call.1} parent=5 // pred_region
        %s166 = ssub.s32 %s16, 1
        // Predicated region
        $region13: #{tpu_custom_call.1} parent=11 // pred_check
          %p167 = pneg %p63
        $region14: #{tpu_custom_call.1} parent=11 // pred_check_branch
          %169 = sbr.rel (%p167) target = $region16
        $region15: #{tpu_custom_call.1} parent=11 // pred_region
          %171 = vsyncadd [#allocation5], 0
          %s172 = sshll.u32 %s1, 4
          %s173 = int_to_ptr.hbm [resolvable:$true] %s172
          %s174 = sshll.u32 [#allocation4], 4
          %s175 = int_to_ptr.vmem [resolvable:$true] %s174
          %180 = dma.hbm_to_vmem [thread:$0]  %s173, 512, %s175, [#allocation5], 128, 128, 8
        $region16: #{tpu_custom_call.1} parent=11 // pred_fallthru
          _
        // Predicated region
        $region17: #{tpu_custom_call.1} parent=11 // pred_check
          %p181 = pneg %p84
        $region18: #{tpu_custom_call.1} parent=11 // pred_check_branch
          %183 = sbr.rel (%p181) target = $region20
        $region19: #{tpu_custom_call.1} parent=11 // pred_region
          _
        $region20: #{tpu_custom_call.1} parent=11 // pred_fallthru
          _
        // Predicated region
        $region21: #{tpu_custom_call.1} parent=11 // pred_check
          %p184 = pneg %p105
        $region22: #{tpu_custom_call.1} parent=11 // pred_check_branch
          %186 = sbr.rel (%p184) target = $region24
        $region23: #{tpu_custom_call.1} parent=11 // pred_region
          %188 = vsyncadd [#allocation5], 0
          %s189 = sshll.u32 %s3, 4
          %s190 = int_to_ptr.hbm [resolvable:$true] %s189
          %s191 = sshll.u32 [#allocation6], 4
          %s192 = int_to_ptr.vmem [resolvable:$true] %s191
          %197 = dma.hbm_to_vmem [thread:$0]  %s190, 2048, %s192, [#allocation5], 128, 128, 8
        $region24: #{tpu_custom_call.1} parent=11 // pred_fallthru
          _
        // Predicated region
        $region25: #{tpu_custom_call.1} parent=11 // pred_check
          %p198 = pneg %p126
        $region26: #{tpu_custom_call.1} parent=11 // pred_check_branch
          %200 = sbr.rel (%p198) target = $region28
        $region27: #{tpu_custom_call.1} parent=11 // pred_region
          %202 = vsyncadd [#allocation8], 0
          %s203 = sshll.u32 %s4, 4
          %s204 = int_to_ptr.hbm [resolvable:$true] %s203
          %s205 = sshll.u32 [#allocation7], 4
          %s206 = int_to_ptr.vmem [resolvable:$true] %s205
          %211 = dma.hbm_to_vmem [thread:$0]  %s204, 2048, %s206, [#allocation8], 128, 128, 8
        $region28: #{tpu_custom_call.1} parent=11 // pred_fallthru
          _
      $region12: #{tpu_custom_call.1} parent=5 // pred_fallthru
        _
      %p212 = scmp.lt.s32.totalorder %s16, 3
      // Predicated region
      $region29: #{tpu_custom_call.1} parent=5 // pred_check
        %p213 = pneg %p212
      $region30: #{tpu_custom_call.1} parent=5 // pred_check_branch
        %215 = sbr.rel (%p213) target = $region32
      $region31: #{tpu_custom_call.1} parent=5 // pred_region
        // Predicated region
        $region33: #{tpu_custom_call.1} parent=31 // pred_check
          %p216 = pneg %p36
        $region34: #{tpu_custom_call.1} parent=31 // pred_check_branch
          %218 = sbr.rel (%p216) target = $region36
        $region35: #{tpu_custom_call.1} parent=31 // pred_region
          %s219 = sand.u32 %s26, 1
          %s220 = scalar_lea.sflag [#allocation3], %s219
          %s221 = sand.u32 %s26, 1
          %s222 = smul.addr %s221, 8
          %s223 = scalar_lea.vmem [#allocation2], %s222
          %225 = vsyncadd %s220, 0
          %s226 = smul.addr %s16, 8
          %s227 = scalar_lea.hbm %s0, %s226
          %s229 = sshll.u32 %s227, 4
          %s230 = int_to_ptr.hbm [resolvable:$true] %s229
          %s231 = sshll.u32 %s223, 4
          %s232 = int_to_ptr.vmem [resolvable:$true] %s231
          %234 = dma.hbm_to_vmem [thread:$0]  %s230, 128, %s232, %s220
        $region36: #{tpu_custom_call.1} parent=31 // pred_fallthru
          _
      $region32: #{tpu_custom_call.1} parent=5 // pred_fallthru
        _
      %p235 = scmp.le.s32.totalorder 1, %s16
      %p236 = scmp.lt.s32.totalorder %s16, 4
      %p237 = pnand %p235, %p236
      %p238 = pneg %p237
      // Predicated region
      $region37: #{tpu_custom_call.1} parent=5 // pred_check
        _
      $region38: #{tpu_custom_call.1} parent=5 // pred_check_branch
        %240 = sbr.rel (%p237) target = $region40
      $region39: #{tpu_custom_call.1} parent=5 // pred_region
        %s241 = ssub.s32 %s16, 1
        %s242 = sand.u32 %s29, 1
        %s243 = scalar_lea.sflag [#allocation3], %s242
        %s244 = sand.u32 %s29, 1
        %s245 = smul.addr %s244, 8
        %s246 = scalar_lea.vmem [#allocation2], %s245
        // Predicated region
        $region41: #{tpu_custom_call.1} parent=39 // pred_check
          %p247 = pneg %p42
        $region42: #{tpu_custom_call.1} parent=39 // pred_check_branch
          %249 = sbr.rel (%p247) target = $region44
        $region43: #{tpu_custom_call.1} parent=39 // pred_region
          %251 = dma.done %s243, 128
        $region44: #{tpu_custom_call.1} parent=39 // pred_fallthru
          _
        // Predicated region
        $region45: #{tpu_custom_call.1} parent=39 // pred_check
          %p252 = pneg %p63
        $region46: #{tpu_custom_call.1} parent=39 // pred_check_branch
          %254 = sbr.rel (%p252) target = $region48
        $region47: #{tpu_custom_call.1} parent=39 // pred_region
          %256 = dma.done [#allocation5], 512
        $region48: #{tpu_custom_call.1} parent=39 // pred_fallthru
          _
        // Predicated region
        $region49: #{tpu_custom_call.1} parent=39 // pred_check
          %p257 = pneg %p105
        $region50: #{tpu_custom_call.1} parent=39 // pred_check_branch
          %259 = sbr.rel (%p257) target = $region52
        $region51: #{tpu_custom_call.1} parent=39 // pred_region
          %261 = dma.done [#allocation5], 2048
        $region52: #{tpu_custom_call.1} parent=39 // pred_fallthru
          _
        // Predicated region
        $region53: #{tpu_custom_call.1} parent=39 // pred_check
          %p262 = pneg %p126
        $region54: #{tpu_custom_call.1} parent=39 // pred_check_branch
          %264 = sbr.rel (%p262) target = $region56
        $region55: #{tpu_custom_call.1} parent=39 // pred_region
          %266 = dma.done [#allocation8], 2048
        $region56: #{tpu_custom_call.1} parent=39 // pred_fallthru
          _
        %s267 = sand.u32 %s29, 1
        %s268 = scalar_lea.sflag [#allocation3], %s267
        %s269 = sand.u32 %s29, 1
        %s270 = smul.addr %s269, 8
        %s271 = scalar_lea.vmem [#allocation2], %s270
        %p272 = pneg %p42
        %p273 = pneg %p39
        %p274 = pneg %p63
        %p275 = pneg %p60
        %p276 = pneg %p84
        %p277 = pneg %p81
        %p278 = pneg %p105
        %p279 = pneg %p102
        %p280 = pneg %p126
        %p281 = pneg %p123
        %p282 = pneg %p152
        %p283 = pneg %p149
        %p284 = scmp.lt.s32.totalorder %s21, 2
        %s285 = scalar_select %p284, %s21, 2
        %s286 = smul.addr %s285, 8
        %s287 = scalar_lea.vmem %s5, %s286
        %p288 = scmp.lt.s32.totalorder %s21, 2
        %s289 = scalar_select %p288, %s21, 2
        %s290 = smul.addr %s289, 8
        %s291 = scalar_lea.vmem %s5, %s290
        %v292 = vld [vmem:[%s246] sm:$0xff]
        %v293 = vld [vmem:[#allocation4] sm:$0xff]
        %v294 = vld [vmem:[#allocation4 + $0x8] sm:$0xff]
        %v295 = vld [vmem:[#allocation4 + $0x10] sm:$0xff]
        %v296 = vld [vmem:[#allocation4 + $0x18] sm:$0xff]
        %v297 = vld [vmem:[%s2] sm:$0x1]
        %v299 = vperm.slane %v297, 0
        %vm301 = vcmask 261120
        %v303 = vsel %vm301, %v292, 0
        %305 = vmatpush.msra.mxu0 0.0
        %306 = vmatpush.msra.mxu0 0.0
        %307 = vmatpush.msra.mxu0 0.0
        %308 = vmatpush.msra.mxu0 0.0
        %309 = vmatpush.msra.mxu0 0.0
        %310 = vmatpush.msra.mxu0 0.0
        %311 = vmatpush.msra.mxu0 0.0
        %312 = vmatpush.msra.mxu0 0.0
        %313 = vmatpush.msra.mxu0 0.0
        %314 = vmatpush.msra.mxu0 0.0
        %315 = vmatpush.msra.mxu0 0.0
        %316 = vmatpush.msra.mxu0 0.0
        %317 = vmatpush.msra.mxu0 %v296
        %318 = vmatpush.msra.mxu0 %v295
        %319 = vmatpush.msra.mxu0 %v294
        %320 = vmatpush.msra.mxu0 %v293
        %321 = vmatmul.f32.gmra.mxu0 %v303
        %v322 = vpop.f32.mrf.mxu0
        %v323 = vadd.f32 %v299, %v322
        %324 = vdwg.mxu0
        %v325 = vmax.f32 %v323, 0.0
        %v326 = vld [vmem:[#allocation6] sm:$0xff]
        %v327 = vld [vmem:[#allocation6 + $0x8] sm:$0xff]
        %v328 = vld [vmem:[#allocation6 + $0x10] sm:$0xff]
        %v329 = vld [vmem:[#allocation6 + $0x18] sm:$0xff]
        %v330 = vld [vmem:[#allocation6 + $0x20] sm:$0xff]
        %v331 = vld [vmem:[#allocation6 + $0x28] sm:$0xff]
        %v332 = vld [vmem:[#allocation6 + $0x30] sm:$0xff]
        %v333 = vld [vmem:[#allocation6 + $0x38] sm:$0xff]
        %v334 = vld [vmem:[#allocation6 + $0x40] sm:$0xff]
        %v335 = vld [vmem:[#allocation6 + $0x48] sm:$0xff]
        %v336 = vld [vmem:[#allocation6 + $0x50] sm:$0xff]
        %v337 = vld [vmem:[#allocation6 + $0x58] sm:$0xff]
        %v338 = vld [vmem:[#allocation6 + $0x60] sm:$0xff]
        %v339 = vld [vmem:[#allocation6 + $0x68] sm:$0xff]
        %v340 = vld [vmem:[#allocation6 + $0x70] sm:$0xff]
        %v341 = vld [vmem:[#allocation6 + $0x78] sm:$0xff]
        %342 = vmatpush.msra.mxu0 %v341
        %343 = vmatpush.msra.mxu0 %v340
        %344 = vmatpush.msra.mxu0 %v339
        %345 = vmatpush.msra.mxu0 %v338
        %346 = vmatpush.msra.mxu0 %v337
        %347 = vmatpush.msra.mxu0 %v336
        %348 = vmatpush.msra.mxu0 %v335
        %349 = vmatpush.msra.mxu0 %v334
        %350 = vmatpush.msra.mxu0 %v333
        %351 = vmatpush.msra.mxu0 %v332
        %352 = vmatpush.msra.mxu0 %v331
        %353 = vmatpush.msra.mxu0 %v330
        %354 = vmatpush.msra.mxu0 %v329
        %355 = vmatpush.msra.mxu0 %v328
        %356 = vmatpush.msra.mxu0 %v327
        %357 = vmatpush.msra.mxu0 %v326
        %358 = vmatmul.f32.gmra.mxu0 %v325
        %v359 = vpop.f32.mrf.mxu0
        %v360 = vadd.f32 0.0, %v359
        %361 = vdwg.mxu0
        %v362 = vmax.f32 %v360, 0.0
        %v363 = vld [vmem:[#allocation7] sm:$0xff]
        %v364 = vld [vmem:[#allocation7 + $0x8] sm:$0xff]
        %v365 = vld [vmem:[#allocation7 + $0x10] sm:$0xff]
        %v366 = vld [vmem:[#allocation7 + $0x18] sm:$0xff]
        %v367 = vld [vmem:[#allocation7 + $0x20] sm:$0xff]
        %v368 = vld [vmem:[#allocation7 + $0x28] sm:$0xff]
        %v369 = vld [vmem:[#allocation7 + $0x30] sm:$0xff]
        %v370 = vld [vmem:[#allocation7 + $0x38] sm:$0xff]
        %v371 = vld [vmem:[#allocation7 + $0x40] sm:$0xff]
        %v372 = vld [vmem:[#allocation7 + $0x48] sm:$0xff]
        %v373 = vld [vmem:[#allocation7 + $0x50] sm:$0xff]
        %v374 = vld [vmem:[#allocation7 + $0x58] sm:$0xff]
        %v375 = vld [vmem:[#allocation7 + $0x60] sm:$0xff]
        %v376 = vld [vmem:[#allocation7 + $0x68] sm:$0xff]
        %v377 = vld [vmem:[#allocation7 + $0x70] sm:$0xff]
        %v378 = vld [vmem:[#allocation7 + $0x78] sm:$0xff]
        %379 = vmatpush.msra.mxu0 %v378
        %380 = vmatpush.msra.mxu0 %v377
        %381 = vmatpush.msra.mxu0 %v376
        %382 = vmatpush.msra.mxu0 %v375
        %383 = vmatpush.msra.mxu0 %v374
        %384 = vmatpush.msra.mxu0 %v373
        %385 = vmatpush.msra.mxu0 %v372
        %386 = vmatpush.msra.mxu0 %v371
        %387 = vmatpush.msra.mxu0 %v370
        %388 = vmatpush.msra.mxu0 %v369
        %389 = vmatpush.msra.mxu0 %v368
        %390 = vmatpush.msra.mxu0 %v367
        %391 = vmatpush.msra.mxu0 %v366
        %392 = vmatpush.msra.mxu0 %v365
        %393 = vmatpush.msra.mxu0 %v364
        %394 = vmatpush.msra.mxu0 %v363
        %395 = vmatmul.f32.gmra.mxu0 %v362
        %v396 = vpop.f32.mrf.mxu0
        %v397 = vadd.f32 0.0, %v396
        %398 = vdwg.mxu0
        %vm399 = vcmask 31744
        %400 = vst.msk [vmem:[%s291] sm:$0xff] %vm399, %v397
        %p401 = scmp.lt.s32.totalorder %s21, 2
        %s402 = scalar_select %p401, %s21, 2
        %s403 = smul.addr %s402, 8
        %s404 = scalar_lea.vmem %s5, %s403
        // Predicated region
        $region57: #{tpu_custom_call.1} parent=39 // pred_check
          %p405 = pneg %p149
        $region58: #{tpu_custom_call.1} parent=39 // pred_check_branch
          %407 = sbr.rel (%p405) target = $region60
        $region59: #{tpu_custom_call.1} parent=39 // pred_region
          _
        $region60: #{tpu_custom_call.1} parent=39 // pred_fallthru
          _
      $region40: #{tpu_custom_call.1} parent=5 // pred_fallthru
        _
      %p408 = scmp.le.s32.totalorder 2, %s16
      // Predicated region
      $region61: #{tpu_custom_call.1} parent=5 // pred_check
        %p409 = pneg %p408
      $region62: #{tpu_custom_call.1} parent=5 // pred_check_branch
        %411 = sbr.rel (%p409) target = $region64
      $region63: #{tpu_custom_call.1} parent=5 // pred_region
        %s412 = ssub.s32 %s16, 2
        // Predicated region
        $region65: #{tpu_custom_call.1} parent=63 // pred_check
          %p413 = pneg %p155
        $region66: #{tpu_custom_call.1} parent=63 // pred_check_branch
          %415 = sbr.rel (%p413) target = $region68
        $region67: #{tpu_custom_call.1} parent=63 // pred_region
          %p416 = scmp.lt.s32.totalorder %s22, 2
          %s417 = scalar_select %p416, %s22, 2
          %s418 = smul.addr %s417, 8
          %s419 = scalar_lea.vmem %s5, %s418
        $region68: #{tpu_custom_call.1} parent=63 // pred_fallthru
          _
      $region64: #{tpu_custom_call.1} parent=5 // pred_fallthru
        _
    $region6: #{tpu_custom_call.1} parent=1 // loop_footer
      %s20 = sadd.s32 1, %s16
    $region7: #{tpu_custom_call.1} parent=1 // loop_footer_branch
      %15 = sbr.rel target = $region3
    $region8: #{tpu_custom_call.1} parent=1 // loop_exit
      _
    %420 = vsyncpa [#allocation3], 1
    %s421 = scalar_lea.sflag [#allocation3], 1
    %422 = vsyncpa %s421, 1
    %423 = vsyncpa [#allocation5], 1
    %424 = vsyncpa [#allocation8], 1

</llo_original>
